<compile_context>
chip_gen: v6e
topology: v6e:2x2x1
jax: 0.10.0
libtpu: 0.0.40
codegen_flags: <defaults>
</compile_context>

<pallas_src>
import functools

import numpy as np
import jax
import jax.numpy as jnp
from jax.experimental import pallas as pl
from jax.experimental.pallas import tpu as pltpu

LANES = 128
SUBLANES = 8
MAX_BLOCK_ROWS = 8192   # (8192, 128) f32 = 4 MiB per block per input


def _cdiv(a, b):
    return (a + b - 1) // b


def _round_up(x, m):
    return _cdiv(x, m) * m


def _sublane_multiple(dtype) -> int:
    # Packed sub-32-bit dtypes tile as (16,128) (bf16/f16) / (32,128) (int8/fp8).
    itemsize = np.dtype(dtype).itemsize
    return SUBLANES * max(1, 4 // max(1, itemsize))


def _detect_num_tensorcores() -> int:
    """Best-effort TensorCores-per-chip (v7x=2, v5e/v6e=1). Defaults to 1."""
    try:
        info = pltpu.get_tpu_info()
        for attr in ("num_cores", "num_tensorcores", "tensorcore_count",
                     "cores_per_chip", "num_tensor_cores"):
            n = getattr(info, attr, None)
            if isinstance(n, int) and n >= 1:
                return n
    except Exception:
        pass
    try:
        kind = jax.devices()[0].device_kind.lower()
        if "v7" in kind or "7x" in kind:
            return 2
    except Exception:
        pass
    return 1


def _mse_partial_kernel(p_ref, t_ref, out_ref, acc_ref, *,
                        block_rows, blocks_per_part, n_rows, need_mask):
    part = pl.program_id(0)   # TC-parallel axis on v7x (size 1 elsewhere)
    i = pl.program_id(1)      # sequential reduction axis

    @pl.when(i == 0)
    def _():
        acc_ref[...] = jnp.zeros_like(acc_ref)

    # Hot loop: pure VPU elementwise work; the only cross-lane reduce is
    # deferred to the last grid step.
    d = p_ref[...].astype(jnp.float32) - t_ref[...].astype(jnp.float32)
    sq = d * d

    def _accumulate(vals):
        # Tile-aligned (…,8,128) reshape: elementwise adds across (8,128)
        # tiles into a single-vreg-tall accumulator; no layout movement.
        acc_ref[...] += vals.reshape(-1, SUBLANES, LANES).sum(axis=0)

    if need_mask:
        blk = part * blocks_per_part + i          # unclamped logical block id
        is_full = (blk + 1) * block_rows <= n_rows

        @pl.when(is_full)
        def _():
            _accumulate(sq)

        @pl.when(jnp.logical_not(is_full))
        def _():
            # Only the true last / clamped over-assigned block pays for the
            # iota + compare + select.
            row0 = blk * block_rows
            rows = row0 + jax.lax.broadcasted_iota(jnp.int32, sq.shape, 0)
            _accumulate(jnp.where(rows < n_rows, sq, 0.0))
    else:
        _accumulate(sq)

    @pl.when(i == pl.num_programs(1) - 1)
    def _():
        # Single deferred cross-sublane reduce per part: (1, 1, 128) partial.
        out_ref[...] = jnp.sum(acc_ref[...], axis=0,
                               keepdims=True).reshape(1, 1, LANES)


def _bulk_sum_sq(p2, t2):
    """Sum of squared differences over an (n_rows, 128) slab via Pallas."""
    n_rows = p2.shape[0]
    sub_mult = max(_sublane_multiple(p2.dtype), _sublane_multiple(t2.dtype))
    num_parts = _detect_num_tensorcores()

    # Rows per block: split ~evenly across parts, aligned to the packed-tile
    # sublane multiple, capped so 2 inputs x 2 buffers stays <= 16 MiB VMEM.
    block_rows = min(MAX_BLOCK_ROWS,
                     _round_up(_cdiv(n_rows, num_parts), sub_mult))
    n_blocks = _cdiv(n_rows, block_rows)
    blocks_per_part = _cdiv(n_blocks, num_parts)
    need_mask = (n_rows % block_rows != 0) or (n_blocks % num_parts != 0)

    def in_map(part, i):
        b = part * blocks_per_part + i
        return (jnp.minimum(b, n_blocks - 1), 0)   # clamp; masked in-kernel

    kernel = functools.partial(
        _mse_partial_kernel,
        block_rows=block_rows,
        blocks_per_part=blocks_per_part,
        n_rows=n_rows,
        need_mask=need_mask,
    )

    bulk_n = p2.size
    cost = pl.CostEstimate(
        flops=3 * bulk_n,
        transcendentals=0,
        bytes_accessed=bulk_n * (p2.dtype.itemsize + t2.dtype.itemsize)
        + num_parts * LANES * 4,
    )

    if num_parts > 1 and hasattr(pltpu, "CORE_PARALLEL"):
        # v7x: actually shard the part axis across both TensorCores.
        dims = (pltpu.CORE_PARALLEL, pltpu.ARBITRARY)
    elif num_parts > 1:
        dims = ("parallel", "arbitrary")
    else:
        dims = ("arbitrary", "arbitrary")

    partials = pl.pallas_call(
        kernel,
        out_shape=jax.ShapeDtypeStruct((num_parts, 1, LANES), jnp.float32),
        grid_spec=pltpu.PrefetchScalarGridSpec(
            num_scalar_prefetch=0,
            grid=(num_parts, blocks_per_part),
            in_specs=[
                pl.BlockSpec((block_rows, LANES), in_map),
                pl.BlockSpec((block_rows, LANES), in_map),
            ],
            out_specs=pl.BlockSpec((1, 1, LANES), lambda part, i: (part, 0, 0)),
            scratch_shapes=[pltpu.VMEM((SUBLANES, LANES), jnp.float32)],
        ),
        compiler_params=pltpu.CompilerParams(
            dimension_semantics=dims,
            vmem_limit_bytes=32 * 1024 * 1024,
        ),
        cost_estimate=cost,
    )(p2, t2)

    return jnp.sum(partials)


def mse_loss(predictions: jax.Array, targets: jax.Array) -> jax.Array:
    """Scalar MSE, matching torch.mean((predictions - targets) ** 2)."""
    if predictions.shape != targets.shape:
        # torch broadcasts its operands; mirror that.
        predictions, targets = jnp.broadcast_arrays(predictions, targets)

    total_n = predictions.size
    granule = LANES * max(_sublane_multiple(predictions.dtype),
                          _sublane_multiple(targets.dtype))

    p_flat = predictions.reshape(-1)
    t_flat = targets.reshape(-1)

    sum_sq = jnp.float32(0.0)
    if total_n >= granule and total_n % granule == 0:
        # Fast path: aligned size -> reshape the whole flat buffer (free
        # bitcast, no [:bulk] slice that could materialize a pre-copy).
        sum_sq = sum_sq + _bulk_sum_sq(p_flat.reshape(-1, LANES),
                                       t_flat.reshape(-1, LANES))
    else:
        # Bulk = largest multiple of one packed tile; remainder (< granule
        # elements) is summed in plain JAX and folded into the mean.
        bulk = (total_n // granule) * granule
        if bulk > 0:
            sum_sq = sum_sq + _bulk_sum_sq(p_flat[:bulk].reshape(-1, LANES),
                                           t_flat[:bulk].reshape(-1, LANES))
        if bulk < total_n:
            d = (p_flat[bulk:].astype(jnp.float32)
                 - t_flat[bulk:].astype(jnp.float32))
            sum_sq = sum_sq + jnp.sum(d * d)

    return sum_sq / jnp.float32(total_n)


if __name__ == "__main__":
    key = jax.random.PRNGKey(0)
    k1, k2 = jax.random.split(key)
    # Module has no parameters; deterministic example inputs (NCHW).
    x = jax.random.normal(k1, (2, 4, 16, 16), dtype=jnp.float32)  # predictions
    y = jax.random.normal(k2, (2, 4, 16, 16), dtype=jnp.float32)  # targets

    loss = mse_loss(x, y)
    jax.block_until_ready(loss)
    ref = jnp.mean((x - y) ** 2)
    assert jnp.allclose(loss, ref, rtol=1e-5, atol=1e-6), (loss, ref)

    # Extra coverage: tiny ragged input (tail-only path) and a mixed
    # bulk + tail / possibly-masked multi-block case.
    for shape in [(3, 5, 7), (5, 3, 16, 17)]:
        a = jax.random.normal(k1, shape, dtype=jnp.float32)
        b = jax.random.normal(k2, shape, dtype=jnp.float32)
        got = mse_loss(a, b)
        jax.block_until_ready(got)
        want = jnp.mean((a - b) ** 2)
        assert jnp.allclose(got, want, rtol=1e-5, atol=1e-6), (shape, got, want)

    print("KERNEL_OK")
</pallas_src>

<mosaic_0001>
module attributes {stable_mosaic.version = 11 : i64} {
  func.func @_mse_partial_kernel(%arg0: i32, %arg1: i32, %arg2: memref<16x128xf32, #tpu.memory_space<vmem>>, %arg3: memref<16x128xf32, #tpu.memory_space<vmem>>, %arg4: memref<1x1x128xf32, #tpu.memory_space<vmem>>, %arg5: memref<8x128xf32, #tpu.memory_space<vmem>>) attributes {dimension_semantics = [#tpu.dimension_semantics<arbitrary>, #tpu.dimension_semantics<arbitrary>], iteration_bounds = array<i64: 1, 1>, scalar_prefetch = 0 : i64, scratch_operands = 1 : i64, tpu.core_type = #tpu.core_type<tc>, window_params = [{transform_indices = @transform_0, window_bounds = array<i64: 16, 128>}, {transform_indices = @transform_1, window_bounds = array<i64: 16, 128>}, {transform_indices = @transform_2, window_bounds = array<i64: 1, 1, 128>}]} {
    %c0_i32 = arith.constant 0 : i32
    %0 = arith.cmpi eq, %arg1, %c0_i32 : i32
    %1 = arith.extui %0 : i1 to i32
    %c0_i32_0 = arith.constant 0 : i32
    %2 = arith.cmpi ne, %1, %c0_i32_0 : i32
    scf.if %2 {
      %cst_10 = arith.constant 0.000000e+00 : f32
      %15 = vector.broadcast %cst_10 : f32 to vector<8x128xf32>
      %c0_11 = arith.constant 0 : index
      %c0_12 = arith.constant 0 : index
      %16 = vector.load %arg5[%c0_11, %c0_12] : memref<8x128xf32, #tpu.memory_space<vmem>>, vector<8x128xf32>
      tpu.vector_store %arg5[%c0_11, %c0_12], %15 {strides = array<i32>} : memref<8x128xf32, #tpu.memory_space<vmem>>, vector<8x128xf32>,
    } else {
    }
    %c0 = arith.constant 0 : index
    %c0_1 = arith.constant 0 : index
    %3 = vector.load %arg2[%c0, %c0_1] : memref<16x128xf32, #tpu.memory_space<vmem>>, vector<16x128xf32>
    %c0_2 = arith.constant 0 : index
    %c0_3 = arith.constant 0 : index
    %4 = vector.load %arg3[%c0_2, %c0_3] : memref<16x128xf32, #tpu.memory_space<vmem>>, vector<16x128xf32>
    %5 = arith.subf %3, %4 : vector<16x128xf32>
    %6 = arith.mulf %5, %5 : vector<16x128xf32>
    %c0_4 = arith.constant 0 : index
    %c0_5 = arith.constant 0 : index
    %7 = vector.load %arg5[%c0_4, %c0_5] : memref<8x128xf32, #tpu.memory_space<vmem>>, vector<8x128xf32>
    %8 = vector.shape_cast %6 : vector<16x128xf32> to vector<2x8x128xf32>
    %cst = arith.constant dense<0.000000e+00> : vector<8x128xf32>
    %9 = vector.multi_reduction <add>, %8, %cst [0] : vector<2x8x128xf32> to vector<8x128xf32>
    %10 = arith.addf %7, %9 : vector<8x128xf32>
    %c0_6 = arith.constant 0 : index
    %c0_7 = arith.constant 0 : index
    %11 = vector.load %arg5[%c0_6, %c0_7] : memref<8x128xf32, #tpu.memory_space<vmem>>, vector<8x128xf32>
    tpu.vector_store %arg5[%c0_6, %c0_7], %10 {strides = array<i32>} : memref<8x128xf32, #tpu.memory_space<vmem>>, vector<8x128xf32>,
    %c0_i32_8 = arith.constant 0 : i32
    %12 = arith.cmpi eq, %arg1, %c0_i32_8 : i32
    %13 = arith.extui %12 : i1 to i32
    %c0_i32_9 = arith.constant 0 : i32
    %14 = arith.cmpi ne, %13, %c0_i32_9 : i32
    scf.if %14 {
      %c0_10 = arith.constant 0 : index
      %c0_11 = arith.constant 0 : index
      %15 = vector.load %arg5[%c0_10, %c0_11] : memref<8x128xf32, #tpu.memory_space<vmem>>, vector<8x128xf32>
      %cst_12 = arith.constant dense<0.000000e+00> : vector<128xf32>
      %16 = vector.multi_reduction <add>, %15, %cst_12 [0] : vector<8x128xf32> to vector<128xf32>
      %17 = vector.shape_cast %16 : vector<128xf32> to vector<1x128xf32>
      %18 = vector.shape_cast %17 : vector<1x128xf32> to vector<1x1x128xf32>
      %c0_13 = arith.constant 0 : index
      %c0_14 = arith.constant 0 : index
      %c0_15 = arith.constant 0 : index
      %19 = vector.load %arg4[%c0_13, %c0_14, %c0_15] : memref<1x1x128xf32, #tpu.memory_space<vmem>>, vector<1x1x128xf32>
      tpu.vector_store %arg4[%c0_13, %c0_14, %c0_15], %18 {strides = array<i32>} : memref<1x1x128xf32, #tpu.memory_space<vmem>>, vector<1x1x128xf32>,
    } else {
    }
    return
  }
  func.func @transform_0(%arg0: i32, %arg1: i32) -> (i32, i32) {
    %c1_i32 = arith.constant 1 : i32
    %0 = arith.muli %arg0, %c1_i32 : i32
    %1 = arith.addi %0, %arg1 : i32
    %c0_i32 = arith.constant 0 : i32
    %2 = arith.minsi %1, %c0_i32 : i32
    %c0_i32_0 = arith.constant 0 : i32
    %c0_i32_1 = arith.constant 0 : i32
    return %2, %c0_i32_0 : i32, i32
  }
  func.func @transform_1(%arg0: i32, %arg1: i32) -> (i32, i32) {
    %c1_i32 = arith.constant 1 : i32
    %0 = arith.muli %arg0, %c1_i32 : i32
    %1 = arith.addi %0, %arg1 : i32
    %c0_i32 = arith.constant 0 : i32
    %2 = arith.minsi %1, %c0_i32 : i32
    %c0_i32_0 = arith.constant 0 : i32
    %c0_i32_1 = arith.constant 0 : i32
    return %2, %c0_i32_0 : i32, i32
  }
  func.func @transform_2(%arg0: i32, %arg1: i32) -> (i32, i32, i32) {
    %c0_i32 = arith.constant 0 : i32
    %c0_i32_0 = arith.constant 0 : i32
    %c0_i32_1 = arith.constant 0 : i32
    return %arg0, %c0_i32, %c0_i32_0 : i32, i32, i32
  }
}

</mosaic_0001>

<llo_original>
// kernel: tpu_custom_call.1
$region0: #{tpu_custom_call.1}
  #allocation0 [shape = 'u32[]', space=smem, size = 0x4, offset = 0x4, fixed_abs, tag = 'smem constant byte address 0x4 - core index']
  #allocation1 [shape = 'u32[144,128]{1,0:T(1,128)}', space=vmem, size = 0x12000, scoped, tag = 'internal scratch']
  #allocation2 [shape = 'f32[8,128]{1,0:T(8,128)}', space=vmem, size = 0x1000, scoped, tag = 'scratch operand']
  %s0 = inlined_call_operand.hbm [shape: f32[16,128], index: 0, kind: input, shape index: {}]
  %s1 = inlined_call_operand.hbm [shape: f32[16,128], index: 1, kind: input, shape index: {}]
  %s2 = inlined_call_operand.hbm [shape: f32[1,1,128], index: 2, kind: output, shape index: {}]
  %s3 = sld [smem:[#allocation0]]
  $region34: #{tpu_custom_call.1} parent=0
    _
  %s5 = ssub.s32 1, %s3
  %s6 = scalar_select 0, %s5, %s3
  $region1: #{tpu_custom_call.1} parent=0
    #allocation3 [shape = 'u8[8192]{0}', space=vmem, size = 0x2000, scoped, tag = 'input window, operand 0, single buffered']
    #allocation4 [shape = 's32[1]{0}', space=sflag, size = 0x4, scoped, tag = 'scoped memory for tpu_custom_call.1']
    #allocation5 [shape = 's32[1]{0}', space=sflag, size = 0x4, scoped, tag = 'scoped memory for tpu_custom_call.1']
    #allocation6 [shape = 'u8[8192]{0}', space=vmem, size = 0x2000, scoped, tag = 'input window, operand 1, single buffered']
    #allocation7 [shape = 's32[1]{0}', space=sflag, size = 0x4, scoped, tag = 'scoped memory for tpu_custom_call.1']
    #allocation8 [shape = 'u8[512]{0}', space=vmem, size = 0x400, scoped, tag = 'output window, operand 0, single buffered']
    %7 = vsyncpa [#allocation4], 0
    %8 = vsyncpa [#allocation7], 0
    %9 = vsyncpa [#allocation5], 0
    // Predicated region
    $region2: #{tpu_custom_call.1} parent=1 // pred_check
      _
    $region3: #{tpu_custom_call.1} parent=1 // pred_check_branch
      %11 = sbr.rel (0) target = $region5
    $region4: #{tpu_custom_call.1} parent=1 // pred_region
      %s12 = sadd.s32 0, 0
      %p13 = scmp.lt.s32.totalorder %s12, 0
      %s14 = scalar_select %p13, %s12, 0
      %s15 = smul.u32 2, %s14
      %s17 = ssub.s32 256, 256
      %18 = vsyncadd [#allocation4], %s17
      %s19 = smul.addr %s15, 128
      %s20 = scalar_lea.hbm %s0, %s19
      %s21 = sshll.u32 [#allocation3], 4
      %s22 = int_to_ptr.vmem [resolvable:$true] %s21
      %27 = dma.hbm_to_vmem [thread:$0]  %s20, 256, %s22, [#allocation4], 128, 128, 8
    $region5: #{tpu_custom_call.1} parent=1 // pred_fallthru
      _
    // Predicated region
    $region6: #{tpu_custom_call.1} parent=1 // pred_check
      _
    $region7: #{tpu_custom_call.1} parent=1 // pred_check_branch
      %29 = sbr.rel (0) target = $region9
    $region8: #{tpu_custom_call.1} parent=1 // pred_region
      %s30 = sadd.s32 0, 0
      %p31 = scmp.lt.s32.totalorder %s30, 0
      %s32 = scalar_select %p31, %s30, 0
      %s33 = smul.u32 2, %s32
      %s35 = ssub.s32 256, 256
      %36 = vsyncadd [#allocation7], %s35
      %s37 = smul.addr %s33, 128
      %s38 = scalar_lea.hbm %s1, %s37
      %s39 = sshll.u32 [#allocation6], 4
      %s40 = int_to_ptr.vmem [resolvable:$true] %s39
      %45 = dma.hbm_to_vmem [thread:$0]  %s38, 256, %s40, [#allocation7], 128, 128, 8
    $region9: #{tpu_custom_call.1} parent=1 // pred_fallthru
      _
    // Predicated region
    $region10: #{tpu_custom_call.1} parent=1 // pred_check
      _
    $region11: #{tpu_custom_call.1} parent=1 // pred_check_branch
      %47 = sbr.rel (0) target = $region13
    $region12: #{tpu_custom_call.1} parent=1 // pred_region
      %48 = dma.done [#allocation4], 256
    $region13: #{tpu_custom_call.1} parent=1 // pred_fallthru
      _
    // Predicated region
    $region14: #{tpu_custom_call.1} parent=1 // pred_check
      _
    $region15: #{tpu_custom_call.1} parent=1 // pred_check_branch
      %50 = sbr.rel (0) target = $region17
    $region16: #{tpu_custom_call.1} parent=1 // pred_region
      %51 = dma.done [#allocation7], 256
    $region17: #{tpu_custom_call.1} parent=1 // pred_fallthru
      _
    %s52 = sadd.s32 0, 0
    %p53 = scmp.lt.s32.totalorder %s52, 0
    %s54 = scalar_select %p53, %s52, 0
    %s55 = smul.u32 2, %s54
    %s56 = sadd.s32 0, 0
    %p57 = scmp.lt.s32.totalorder %s56, 0
    %s58 = scalar_select %p57, %s56, 0
    %s59 = smul.u32 2, %s58
    %p60 = scmp.eq.s32.totalorder 0, 0
    // Predicated region
    $region18: #{tpu_custom_call.1} parent=1 // pred_check
      %p61 = pneg %p60
    $region19: #{tpu_custom_call.1} parent=1 // pred_check_branch
      %63 = sbr.rel (%p61) target = $region21
    $region20: #{tpu_custom_call.1} parent=1 // pred_region
      %64 = vst [vmem:[#allocation2] sm:$0xff] 0.0
    $region21: #{tpu_custom_call.1} parent=1 // pred_fallthru
      _
    %v65 = vld [vmem:[#allocation3] sm:$0xff]
    %v66 = vld [vmem:[#allocation3 + $0x8] sm:$0xff]
    %v67 = vld [vmem:[#allocation6] sm:$0xff]
    %v68 = vld [vmem:[#allocation6 + $0x8] sm:$0xff]
    %v69 = vsub.f32 %v65, %v67
    %v70 = vsub.f32 %v66, %v68
    %v71 = vmul.f32 %v69, %v69
    %v72 = vmul.f32 %v70, %v70
    %v73 = vld [vmem:[#allocation2] sm:$0xff]
    %v74 = vadd.f32 %v71, %v72
    %v75 = vadd.f32 %v73, %v74
    %76 = vst [vmem:[#allocation2] sm:$0xff] %v75
    // Predicated region
    $region22: #{tpu_custom_call.1} parent=1 // pred_check
      %p77 = pneg %p60
    $region23: #{tpu_custom_call.1} parent=1 // pred_check_branch
      %79 = sbr.rel (%p77) target = $region25
    $region24: #{tpu_custom_call.1} parent=1 // pred_region
      %v80 = vld [vmem:[#allocation2] sm:$0xff]
      %v81 = vrot.slane %v80, 4
      %v82 = vadd.f32 %v80, %v81
      %v83 = vrot.slane %v82, 2
      %v84 = vadd.f32 %v82, %v83
      %v85 = vrot.slane %v84, 1
      %v86 = vadd.f32 %v84, %v85
      %87 = vst [vmem:[#allocation8] sm:$0x1] %v86
    $region25: #{tpu_custom_call.1} parent=1 // pred_fallthru
      _
    // Predicated region
    $region26: #{tpu_custom_call.1} parent=1 // pred_check
      _
    $region27: #{tpu_custom_call.1} parent=1 // pred_check_branch
      %89 = sbr.rel (0) target = $region29
    $region28: #{tpu_custom_call.1} parent=1 // pred_region
      %s91 = ssub.s32 16, 16
      %92 = vsyncadd [#allocation5], %s91
      %s94 = sshll.u32 [#allocation8], 4
      %s95 = int_to_ptr.vmem [resolvable:$true] %s94
      %97 = dma.vmem_to_hbm [thread:$0]  %s95, 16, %s2, [#allocation5]
    $region29: #{tpu_custom_call.1} parent=1 // pred_fallthru
      _
    // Predicated region
    $region30: #{tpu_custom_call.1} parent=1 // pred_check
      _
    $region31: #{tpu_custom_call.1} parent=1 // pred_check_branch
      %99 = sbr.rel (0) target = $region33
    $region32: #{tpu_custom_call.1} parent=1 // pred_region
      %100 = dma.done [#allocation5], 16
    $region33: #{tpu_custom_call.1} parent=1 // pred_fallthru
      _
    %101 = vsyncpa [#allocation4], 1
    %102 = vsyncpa [#allocation7], 1
    %103 = vsyncpa [#allocation5], 1

</llo_original>
